<compile_context>
chip_gen: v5e
topology: v5e:2x2
jax: 0.10.0
libtpu: 0.0.40
codegen_flags: <defaults>
</compile_context>

<pallas_src>
import functools
import math

import jax
import jax.numpy as jnp
from jax import lax
from jax.experimental import pallas as pl
from jax.experimental.pallas import tpu as pltpu

_LANES = 128
_SUBLANES = 8
_STATIC_UNROLL_MAX = 32      # fully unroll the chunk loop up to this many 128-lane chunks
_MAX_TILE_B = 4096           # cap on batch rows per block (keeps acc/out blocks small)


def _tpu_budgets():
    """(target_block_bytes, vmem_limit_bytes) chosen from the chip's VMEM size."""
    try:
        vmem_cap = int(pltpu.get_tpu_info().vmem_capacity_bytes)
    except Exception:  # info unavailable (e.g. interpret mode) -> conservative defaults
        vmem_cap = 64 << 20
    if vmem_cap >= (96 << 20):          # v5e / v6e class (128 MiB physical VMEM)
        return 8 << 20, 64 << 20
    return 6 << 20, 48 << 20            # v7x class (64 MiB physical VMEM)


def _choose_virtual_split(batch, n_feat):
    """Split each sample's feature axis into `s` virtual rows so the "parallel"
    batch-block grid axis has >=2 blocks (keeps both v7x TensorCores busy).

    Requirements: (B, N) -> (B*s, N//s) must be a free reshape (N % s == 0),
    the virtual batch must be 8-sublane tileable with >=2 blocks
    (B*s % 8 == 0, B*s >= 16), and virtual rows must stay reasonably long.
    """
    if batch >= 16 and batch % _SUBLANES == 0:
        return 1
    for s in range(2, 17):
        b2 = batch * s
        if n_feat % s == 0 and b2 % _SUBLANES == 0 and b2 >= 16 and (n_feat // s) >= 512:
            return s
    return 1


def _choose_tile_b(b2, n2, itemsize, target_block_bytes):
    """Batch rows per block: a multiple of 8 dividing b2 (no batch tail), big
    enough to fill the byte budget when rows are short, but <= b2//2 so the
    "parallel" axis keeps >= 2 blocks."""
    if b2 <= _SUBLANES or b2 % _SUBLANES != 0:
        return b2                      # single full-dim batch block (always legal)
    desired = max(_SUBLANES, target_block_bytes // max(1, n2 * itemsize))
    desired = min(desired, b2 // 2, _MAX_TILE_B)
    desired = max(_SUBLANES, (desired // _SUBLANES) * _SUBLANES)
    tile_b = _SUBLANES
    cand = _SUBLANES
    while cand <= desired:
        if b2 % cand == 0:
            tile_b = cand
        cand += _SUBLANES
    return tile_b


def _sq_sum_kernel(pred_ref, tgt_ref, out_ref, acc_ref, *,
                   n_valid, tile_n, chunked, need_mask):
    """Per-row sum of squared error, streamed over the feature axis.

    pred_ref, tgt_ref : (tile_b, tile_n) blocks in the inputs' native dtype
    out_ref           : (tile_b, 1) f32 per-row SUM (written on the last feature step)
    acc_ref           : (tile_b, 128) f32 per-lane accumulator (persists over the
                        feature grid axis); XLU lane-reduce deferred to finalize.
    """
    if not chunked:
        # Tiny feature dim (< 128): single full-dim block, direct reduce.
        d = pred_ref[...].astype(jnp.float32) - tgt_ref[...].astype(jnp.float32)
        out_ref[...] = jnp.sum(d * d, axis=1, keepdims=True)
        return

    nb = pl.program_id(1)
    feat_start = nb * tile_n
    tile_b = acc_ref.shape[0]
    n_chunks = tile_n // _LANES

    @pl.when(nb == 0)
    def _init():
        acc_ref[...] = jnp.zeros_like(acc_ref)

    def chunk_sq(off):
        # Cast inside the kernel: HBM traffic stays at the native dtype width;
        # f32 intermediates are only (tile_b, 128) at a time.
        p = pred_ref[:, pl.ds(off, _LANES)].astype(jnp.float32)
        t = tgt_ref[:, pl.ds(off, _LANES)].astype(jnp.float32)
        d = p - t
        sq = d * d
        if need_mask:
            # Zero the out-of-range tail (Pallas block padding is NOT zero-filled).
            lane = lax.broadcasted_iota(jnp.int32, (tile_b, _LANES), 1)
            sq = jnp.where(feat_start + off + lane < n_valid, sq, 0.0)
        return sq

    acc = acc_ref[...]
    if n_chunks <= _STATIC_UNROLL_MAX:
        for j in range(n_chunks):            # static unroll: clean 128-aligned slices
            acc = acc + chunk_sq(j * _LANES)
    else:
        def body(j, a):
            off = pl.multiple_of(j * _LANES, _LANES)
            return a + chunk_sq(off)
        acc = lax.fori_loop(0, n_chunks, body, acc, unroll=8)
    acc_ref[...] = acc

    @pl.when(nb == pl.num_programs(1) - 1)
    def _finalize():
        out_ref[...] = jnp.sum(acc, axis=1, keepdims=True)   # single XLU lane reduce


def _per_row_sq_sum(pred2d, tgt2d):
    """Per-row sum of squared error for (B2, N2) inputs in native dtype -> f32 (B2,)."""
    b2, n2 = pred2d.shape
    itemsize = jnp.dtype(pred2d.dtype).itemsize
    target_block_bytes, vmem_limit_bytes = _tpu_budgets()

    tile_b = _choose_tile_b(b2, n2, itemsize, target_block_bytes)

    if n2 < _LANES:
        tile_n, chunked, need_mask = n2, False, False
    else:
        lanes_budget = max(
            _LANES,
            (target_block_bytes // (tile_b * itemsize)) // _LANES * _LANES,
        )
        tile_n = min((n2 // _LANES) * _LANES, lanes_budget)   # multiple of 128, <= n2
        chunked = True
        need_mask = (n2 % tile_n) != 0

    grid = (pl.cdiv(b2, tile_b), pl.cdiv(n2, tile_n))

    kernel = functools.partial(
        _sq_sum_kernel, n_valid=n2, tile_n=tile_n, chunked=chunked, need_mask=need_mask)

    cost = pl.CostEstimate(
        flops=3 * b2 * n2,
        transcendentals=0,
        bytes_accessed=2 * b2 * n2 * itemsize + b2 * 4,
    )

    out = pl.pallas_call(
        kernel,
        out_shape=jax.ShapeDtypeStruct((b2, 1), jnp.float32),
        grid_spec=pltpu.PrefetchScalarGridSpec(
            num_scalar_prefetch=0,
            grid=grid,
            in_specs=[
                pl.BlockSpec((tile_b, tile_n), lambda b, n: (b, n)),
                pl.BlockSpec((tile_b, tile_n), lambda b, n: (b, n)),
            ],
            out_specs=pl.BlockSpec((tile_b, 1), lambda b, n: (b, 0)),
            scratch_shapes=[pltpu.VMEM((tile_b, _LANES), jnp.float32)],
        ),
        compiler_params=pltpu.CompilerParams(
            dimension_semantics=("parallel", "arbitrary"),
            vmem_limit_bytes=vmem_limit_bytes,
        ),
        cost_estimate=cost,
    )(pred2d, tgt2d)
    return out[:, 0]


def percmae_loss(prediction, target, reduction="mean"):
    """JAX/Pallas equivalent of PercmaeLoss.forward with the default MSE loss_fn."""
    assert prediction.shape == target.shape
    B = prediction.shape[0]
    N = math.prod(prediction.shape[1:])

    pred2d = prediction.reshape(B, N)
    tgt2d = target.reshape(B, N)

    # Free reshape into (B*s, N//s) virtual rows so the batch grid axis can be
    # split across v7x's two TensorCores even for tiny batches.
    s = _choose_virtual_split(B, N)
    pred_v = pred2d.reshape(B * s, N // s)
    tgt_v = tgt2d.reshape(B * s, N // s)

    sums = _per_row_sq_sum(pred_v, tgt_v)          # (B*s,) f32 per-virtual-row sums
    if s > 1:
        sums = sums.reshape(B, s).sum(axis=1)
    per_sample = sums / jnp.float32(N)             # per-sample MEAN over original N

    if reduction == "mean":
        return jnp.mean(per_sample)
    elif reduction == "sum":
        return jnp.sum(per_sample)
    elif reduction == "none":
        return per_sample
    else:
        raise ValueError(f"unknown reduction: {reduction}")


if __name__ == "__main__":
    key = jax.random.PRNGKey(0)
    kp, kt = jax.random.split(key)

    # 1) f32, 128-aligned features: batch=2, channels=4, spatial=16 (N=1024).
    x = jax.random.normal(kp, (2, 4, 16, 16), dtype=jnp.float32)
    y = jax.random.normal(kt, (2, 4, 16, 16), dtype=jnp.float32)
    out_mean = jax.block_until_ready(percmae_loss(x, y, reduction="mean"))
    out_sum = jax.block_until_ready(percmae_loss(x, y, reduction="sum"))
    out_none = jax.block_until_ready(percmae_loss(x, y, reduction="none"))
    ref_none = jnp.mean((x - y).reshape(2, -1) ** 2, axis=1)
    assert jnp.allclose(out_none, ref_none, rtol=1e-5, atol=1e-5)
    assert jnp.allclose(out_mean, jnp.mean(ref_none), rtol=1e-5, atol=1e-5)
    assert jnp.allclose(out_sum, jnp.sum(ref_none), rtol=1e-5, atol=1e-5)

    # 2) bf16, non-128-aligned features (N=300): exercises the in-kernel masked tail
    #    (no wrapper-side padding copies).
    xb = jax.random.normal(kp, (3, 3, 10, 10), dtype=jnp.bfloat16)
    yb = jax.random.normal(kt, (3, 3, 10, 10), dtype=jnp.bfloat16)
    out_b = jax.block_until_ready(percmae_loss(xb, yb, reduction="none"))
    ref_b = jnp.mean(
        (xb.astype(jnp.float32) - yb.astype(jnp.float32)).reshape(3, -1) ** 2, axis=1
    )
    assert jnp.allclose(out_b, ref_b, rtol=1e-3, atol=1e-3)

    # 3) small batch, larger features (N=8192): exercises the virtual-batch split
    #    that gives >= 2 "parallel" batch blocks (v7x dual-TensorCore path).
    xc = jax.random.normal(kp, (2, 8, 32, 32), dtype=jnp.float32)
    yc = jax.random.normal(kt, (2, 8, 32, 32), dtype=jnp.float32)
    out_c = jax.block_until_ready(percmae_loss(xc, yc, reduction="none"))
    ref_c = jnp.mean((xc - yc).reshape(2, -1) ** 2, axis=1)
    assert jnp.allclose(out_c, ref_c, rtol=1e-5, atol=1e-5)

    print("KERNEL_OK")
</pallas_src>

<mosaic_0001>
module attributes {stable_mosaic.version = 11 : i64} {
  func.func @_sq_sum_kernel(%arg0: i32, %arg1: i32, %arg2: memref<2x1024xf32, #tpu.memory_space<vmem>>, %arg3: memref<2x1024xf32, #tpu.memory_space<vmem>>, %arg4: memref<2x1xf32, #tpu.memory_space<vmem>>, %arg5: memref<2x128xf32, #tpu.memory_space<vmem>>) attributes {dimension_semantics = [#tpu.dimension_semantics<parallel>, #tpu.dimension_semantics<arbitrary>], iteration_bounds = array<i64: 1, 1>, scalar_prefetch = 0 : i64, scratch_operands = 1 : i64, tpu.core_type = #tpu.core_type<tc>, window_params = [{transform_indices = @transform_0, window_bounds = array<i64: 2, 1024>}, {transform_indices = @transform_1, window_bounds = array<i64: 2, 1024>}, {transform_indices = @transform_2, window_bounds = array<i64: 2, 1>}]} {
    %c0_i32 = arith.constant 0 : i32
    %0 = arith.cmpi eq, %arg1, %c0_i32 : i32
    %1 = arith.extui %0 : i1 to i32
    %c0_i32_0 = arith.constant 0 : i32
    %2 = arith.cmpi ne, %1, %c0_i32_0 : i32
    scf.if %2 {
      %cst = arith.constant 0.000000e+00 : f32
      %48 = vector.broadcast %cst : f32 to vector<2x128xf32>
      %c0_31 = arith.constant 0 : index
      %c0_32 = arith.constant 0 : index
      %49 = vector.load %arg5[%c0_31, %c0_32] : memref<2x128xf32, #tpu.memory_space<vmem>>, vector<2x128xf32>
      tpu.vector_store %arg5[%c0_31, %c0_32], %48 {strides = array<i32>} : memref<2x128xf32, #tpu.memory_space<vmem>>, vector<2x128xf32>,
    } else {
    }
    %c0 = arith.constant 0 : index
    %c0_1 = arith.constant 0 : index
    %3 = vector.load %arg5[%c0, %c0_1] : memref<2x128xf32, #tpu.memory_space<vmem>>, vector<2x128xf32>
    %c0_2 = arith.constant 0 : index
    %c0_3 = arith.constant 0 : index
    %4 = vector.load %arg2[%c0_2, %c0_3] : memref<2x1024xf32, #tpu.memory_space<vmem>>, vector<2x128xf32>
    %c0_4 = arith.constant 0 : index
    %c0_5 = arith.constant 0 : index
    %5 = vector.load %arg3[%c0_4, %c0_5] : memref<2x1024xf32, #tpu.memory_space<vmem>>, vector<2x128xf32>
    %6 = arith.subf %4, %5 : vector<2x128xf32>
    %7 = arith.mulf %6, %6 : vector<2x128xf32>
    %8 = arith.addf %3, %7 : vector<2x128xf32>
    %c0_6 = arith.constant 0 : index
    %c128 = arith.constant 128 : index
    %9 = vector.load %arg2[%c0_6, %c128] : memref<2x1024xf32, #tpu.memory_space<vmem>>, vector<2x128xf32>
    %c0_7 = arith.constant 0 : index
    %c128_8 = arith.constant 128 : index
    %10 = vector.load %arg3[%c0_7, %c128_8] : memref<2x1024xf32, #tpu.memory_space<vmem>>, vector<2x128xf32>
    %11 = arith.subf %9, %10 : vector<2x128xf32>
    %12 = arith.mulf %11, %11 : vector<2x128xf32>
    %13 = arith.addf %8, %12 : vector<2x128xf32>
    %c0_9 = arith.constant 0 : index
    %c256 = arith.constant 256 : index
    %14 = vector.load %arg2[%c0_9, %c256] : memref<2x1024xf32, #tpu.memory_space<vmem>>, vector<2x128xf32>
    %c0_10 = arith.constant 0 : index
    %c256_11 = arith.constant 256 : index
    %15 = vector.load %arg3[%c0_10, %c256_11] : memref<2x1024xf32, #tpu.memory_space<vmem>>, vector<2x128xf32>
    %16 = arith.subf %14, %15 : vector<2x128xf32>
    %17 = arith.mulf %16, %16 : vector<2x128xf32>
    %18 = arith.addf %13, %17 : vector<2x128xf32>
    %c0_12 = arith.constant 0 : index
    %c384 = arith.constant 384 : index
    %19 = vector.load %arg2[%c0_12, %c384] : memref<2x1024xf32, #tpu.memory_space<vmem>>, vector<2x128xf32>
    %c0_13 = arith.constant 0 : index
    %c384_14 = arith.constant 384 : index
    %20 = vector.load %arg3[%c0_13, %c384_14] : memref<2x1024xf32, #tpu.memory_space<vmem>>, vector<2x128xf32>
    %21 = arith.subf %19, %20 : vector<2x128xf32>
    %22 = arith.mulf %21, %21 : vector<2x128xf32>
    %23 = arith.addf %18, %22 : vector<2x128xf32>
    %c0_15 = arith.constant 0 : index
    %c512 = arith.constant 512 : index
    %24 = vector.load %arg2[%c0_15, %c512] : memref<2x1024xf32, #tpu.memory_space<vmem>>, vector<2x128xf32>
    %c0_16 = arith.constant 0 : index
    %c512_17 = arith.constant 512 : index
    %25 = vector.load %arg3[%c0_16, %c512_17] : memref<2x1024xf32, #tpu.memory_space<vmem>>, vector<2x128xf32>
    %26 = arith.subf %24, %25 : vector<2x128xf32>
    %27 = arith.mulf %26, %26 : vector<2x128xf32>
    %28 = arith.addf %23, %27 : vector<2x128xf32>
    %c0_18 = arith.constant 0 : index
    %c640 = arith.constant 640 : index
    %29 = vector.load %arg2[%c0_18, %c640] : memref<2x1024xf32, #tpu.memory_space<vmem>>, vector<2x128xf32>
    %c0_19 = arith.constant 0 : index
    %c640_20 = arith.constant 640 : index
    %30 = vector.load %arg3[%c0_19, %c640_20] : memref<2x1024xf32, #tpu.memory_space<vmem>>, vector<2x128xf32>
    %31 = arith.subf %29, %30 : vector<2x128xf32>
    %32 = arith.mulf %31, %31 : vector<2x128xf32>
    %33 = arith.addf %28, %32 : vector<2x128xf32>
    %c0_21 = arith.constant 0 : index
    %c768 = arith.constant 768 : index
    %34 = vector.load %arg2[%c0_21, %c768] : memref<2x1024xf32, #tpu.memory_space<vmem>>, vector<2x128xf32>
    %c0_22 = arith.constant 0 : index
    %c768_23 = arith.constant 768 : index
    %35 = vector.load %arg3[%c0_22, %c768_23] : memref<2x1024xf32, #tpu.memory_space<vmem>>, vector<2x128xf32>
    %36 = arith.subf %34, %35 : vector<2x128xf32>
    %37 = arith.mulf %36, %36 : vector<2x128xf32>
    %38 = arith.addf %33, %37 : vector<2x128xf32>
    %c0_24 = arith.constant 0 : index
    %c896 = arith.constant 896 : index
    %39 = vector.load %arg2[%c0_24, %c896] : memref<2x1024xf32, #tpu.memory_space<vmem>>, vector<2x128xf32>
    %c0_25 = arith.constant 0 : index
    %c896_26 = arith.constant 896 : index
    %40 = vector.load %arg3[%c0_25, %c896_26] : memref<2x1024xf32, #tpu.memory_space<vmem>>, vector<2x128xf32>
    %41 = arith.subf %39, %40 : vector<2x128xf32>
    %42 = arith.mulf %41, %41 : vector<2x128xf32>
    %43 = arith.addf %38, %42 : vector<2x128xf32>
    %c0_27 = arith.constant 0 : index
    %c0_28 = arith.constant 0 : index
    %44 = vector.load %arg5[%c0_27, %c0_28] : memref<2x128xf32, #tpu.memory_space<vmem>>, vector<2x128xf32>
    tpu.vector_store %arg5[%c0_27, %c0_28], %43 {strides = array<i32>} : memref<2x128xf32, #tpu.memory_space<vmem>>, vector<2x128xf32>,
    %c0_i32_29 = arith.constant 0 : i32
    %45 = arith.cmpi eq, %arg1, %c0_i32_29 : i32
    %46 = arith.extui %45 : i1 to i32
    %c0_i32_30 = arith.constant 0 : i32
    %47 = arith.cmpi ne, %46, %c0_i32_30 : i32
    scf.if %47 {
      %cst = arith.constant dense<0.000000e+00> : vector<2xf32>
      %48 = vector.multi_reduction <add>, %43, %cst [1] : vector<2x128xf32> to vector<2xf32>
      %49 = vector.shape_cast %48 : vector<2xf32> to vector<2x1xf32>
      %c0_31 = arith.constant 0 : index
      %c0_32 = arith.constant 0 : index
      %50 = vector.load %arg4[%c0_31, %c0_32] : memref<2x1xf32, #tpu.memory_space<vmem>>, vector<2x1xf32>
      tpu.vector_store %arg4[%c0_31, %c0_32], %49 {strides = array<i32>} : memref<2x1xf32, #tpu.memory_space<vmem>>, vector<2x1xf32>,
    } else {
    }
    return
  }
  func.func @transform_0(%arg0: i32, %arg1: i32) -> (i32, i32) {
    %c0_i32 = arith.constant 0 : i32
    return %arg0, %arg1 : i32, i32
  }
  func.func @transform_1(%arg0: i32, %arg1: i32) -> (i32, i32) {
    %c0_i32 = arith.constant 0 : i32
    return %arg0, %arg1 : i32, i32
  }
  func.func @transform_2(%arg0: i32, %arg1: i32) -> (i32, i32) {
    %c0_i32 = arith.constant 0 : i32
    %c0_i32_0 = arith.constant 0 : i32
    return %arg0, %c0_i32 : i32, i32
  }
}

</mosaic_0001>

<llo_original>
// kernel: tpu_custom_call.1
$region0: #{tpu_custom_call.1}
  #allocation0 [shape = 'u32[]', space=smem, size = 0x4, offset = 0x4, fixed_abs, tag = 'smem constant byte address 0x4 - core index']
  #allocation1 [shape = 'u32[72,128]{1,0:T(1,128)}', space=vmem, size = 0x9000, scoped, tag = 'internal scratch']
  #allocation2 [shape = 'f32[2,128]{1,0:T(2,128)}', space=vmem, size = 0x400, scoped, tag = 'scratch operand']
  %s0 = inlined_call_operand.hbm [shape: f32[2,1024], index: 0, kind: input, shape index: {}]
  %s1 = inlined_call_operand.hbm [shape: f32[2,1024], index: 1, kind: input, shape index: {}]
  %s2 = inlined_call_operand.vmem [shape: f32[2,1], index: 2, kind: output, shape index: {}]
  %s3 = sld [smem:[#allocation0]]
  $region34: #{tpu_custom_call.1} parent=0
    _
  %s5 = ssub.s32 1, %s3
  %s6 = scalar_select 0, %s5, %s3
  $region1: #{tpu_custom_call.1} parent=0
    #allocation3 [shape = 'u8[8192]{0}', space=vmem, size = 0x2000, scoped, tag = 'input window, operand 0, single buffered']
    #allocation4 [shape = 's32[1]{0}', space=sflag, size = 0x4, scoped, tag = 'scoped memory for tpu_custom_call.1']
    #allocation5 [shape = 'u8[8192]{0}', space=vmem, size = 0x2000, scoped, tag = 'input window, operand 1, single buffered']
    #allocation6 [shape = 's32[1]{0}', space=sflag, size = 0x4, scoped, tag = 'scoped memory for tpu_custom_call.1']
    %7 = vsyncpa [#allocation4], 0
    %8 = vsyncpa [#allocation6], 0
    // Predicated region
    $region2: #{tpu_custom_call.1} parent=1 // pred_check
      _
    $region3: #{tpu_custom_call.1} parent=1 // pred_check_branch
      %10 = sbr.rel (0) target = $region5
    $region4: #{tpu_custom_call.1} parent=1 // pred_region
      %12 = vsyncadd [#allocation4], 0
      %s14 = sshll.u32 %s0, 4
      %s15 = int_to_ptr.hbm [resolvable:$true] %s14
      %s16 = sshll.u32 [#allocation3], 4
      %s17 = int_to_ptr.vmem [resolvable:$true] %s16
      %19 = dma.hbm_to_vmem [thread:$0]  %s15, 256, %s17, [#allocation4]
    $region5: #{tpu_custom_call.1} parent=1 // pred_fallthru
      _
    // Predicated region
    $region6: #{tpu_custom_call.1} parent=1 // pred_check
      _
    $region7: #{tpu_custom_call.1} parent=1 // pred_check_branch
      %21 = sbr.rel (0) target = $region9
    $region8: #{tpu_custom_call.1} parent=1 // pred_region
      %23 = vsyncadd [#allocation6], 0
      %s25 = sshll.u32 %s1, 4
      %s26 = int_to_ptr.hbm [resolvable:$true] %s25
      %s27 = sshll.u32 [#allocation5], 4
      %s28 = int_to_ptr.vmem [resolvable:$true] %s27
      %30 = dma.hbm_to_vmem [thread:$0]  %s26, 256, %s28, [#allocation6]
    $region9: #{tpu_custom_call.1} parent=1 // pred_fallthru
      _
    // Predicated region
    $region10: #{tpu_custom_call.1} parent=1 // pred_check
      _
    $region11: #{tpu_custom_call.1} parent=1 // pred_check_branch
      %32 = sbr.rel (0) target = $region13
    $region12: #{tpu_custom_call.1} parent=1 // pred_region
      %34 = dma.done [#allocation4], 256
    $region13: #{tpu_custom_call.1} parent=1 // pred_fallthru
      _
    // Predicated region
    $region14: #{tpu_custom_call.1} parent=1 // pred_check
      _
    $region15: #{tpu_custom_call.1} parent=1 // pred_check_branch
      %36 = sbr.rel (0) target = $region17
    $region16: #{tpu_custom_call.1} parent=1 // pred_region
      %38 = dma.done [#allocation6], 256
    $region17: #{tpu_custom_call.1} parent=1 // pred_fallthru
      _
    %p39 = scmp.eq.s32.totalorder 0, 0
    // Predicated region
    $region18: #{tpu_custom_call.1} parent=1 // pred_check
      %p40 = pneg %p39
    $region19: #{tpu_custom_call.1} parent=1 // pred_check_branch
      %42 = sbr.rel (%p40) target = $region21
    $region20: #{tpu_custom_call.1} parent=1 // pred_region
      %43 = vst [vmem:[#allocation2] sm:$0x3] 0.0
    $region21: #{tpu_custom_call.1} parent=1 // pred_fallthru
      _
    %v44 = vld [vmem:[#allocation2] sm:$0x3]
    %v45 = vld [vmem:[#allocation3] sm:$0x3]
    %v46 = vld [vmem:[#allocation5] sm:$0x3]
    %v47 = vsub.f32 %v45, %v46
    %v48 = vmul.f32 %v47, %v47
    %v49 = vadd.f32 %v44, %v48
    %v50 = vld [vmem:[#allocation3 + $0x2] sm:$0x3]
    %v51 = vld [vmem:[#allocation5 + $0x2] sm:$0x3]
    %v52 = vsub.f32 %v50, %v51
    %v53 = vmul.f32 %v52, %v52
    %v54 = vadd.f32 %v49, %v53
    %v55 = vld [vmem:[#allocation3 + $0x4] sm:$0x3]
    %v56 = vld [vmem:[#allocation5 + $0x4] sm:$0x3]
    %v57 = vsub.f32 %v55, %v56
    %v58 = vmul.f32 %v57, %v57
    %v59 = vadd.f32 %v54, %v58
    %v60 = vld [vmem:[#allocation3 + $0x6] sm:$0x3]
    %v61 = vld [vmem:[#allocation5 + $0x6] sm:$0x3]
    %v62 = vsub.f32 %v60, %v61
    %v63 = vmul.f32 %v62, %v62
    %v64 = vadd.f32 %v59, %v63
    %v65 = vld [vmem:[#allocation3 + $0x8] sm:$0x3]
    %v66 = vld [vmem:[#allocation5 + $0x8] sm:$0x3]
    %v67 = vsub.f32 %v65, %v66
    %v68 = vmul.f32 %v67, %v67
    %v69 = vadd.f32 %v64, %v68
    %v70 = vld [vmem:[#allocation3 + $0xa] sm:$0x3]
    %v71 = vld [vmem:[#allocation5 + $0xa] sm:$0x3]
    %v72 = vsub.f32 %v70, %v71
    %v73 = vmul.f32 %v72, %v72
    %v74 = vadd.f32 %v69, %v73
    %v75 = vld [vmem:[#allocation3 + $0xc] sm:$0x3]
    %v76 = vld [vmem:[#allocation5 + $0xc] sm:$0x3]
    %v77 = vsub.f32 %v75, %v76
    %v78 = vmul.f32 %v77, %v77
    %v79 = vadd.f32 %v74, %v78
    %v80 = vld [vmem:[#allocation3 + $0xe] sm:$0x3]
    %v81 = vld [vmem:[#allocation5 + $0xe] sm:$0x3]
    %v82 = vsub.f32 %v80, %v81
    %v83 = vmul.f32 %v82, %v82
    %v84 = vadd.f32 %v79, %v83
    %85 = vst [vmem:[#allocation2] sm:$0x3] %v84
    // Predicated region
    $region22: #{tpu_custom_call.1} parent=1 // pred_check
      %p86 = pneg %p39
    $region23: #{tpu_custom_call.1} parent=1 // pred_check_branch
      %88 = sbr.rel (%p86) target = $region25
    $region24: #{tpu_custom_call.1} parent=1 // pred_region
      %vm89 = vcmask 1041408
      %v90 = vsel %vm89, %v84, 0.0
      %91 = vadd.xlane.f32.xlu0 %v90
      %v92 = vpop.xlane.xlu0 %91
      %vm93 = vcmask 1024
      %94 = vst.msk [vmem:[%s2] sm:$0x3] %vm93, %v92
    $region25: #{tpu_custom_call.1} parent=1 // pred_fallthru
      _
    // Predicated region
    $region26: #{tpu_custom_call.1} parent=1 // pred_check
      _
    $region27: #{tpu_custom_call.1} parent=1 // pred_check_branch
      %96 = sbr.rel (0) target = $region29
    $region28: #{tpu_custom_call.1} parent=1 // pred_region
      _
    $region29: #{tpu_custom_call.1} parent=1 // pred_fallthru
      _
    // Predicated region
    $region30: #{tpu_custom_call.1} parent=1 // pred_check
      _
    $region31: #{tpu_custom_call.1} parent=1 // pred_check_branch
      %98 = sbr.rel (0) target = $region33
    $region32: #{tpu_custom_call.1} parent=1 // pred_region
      _
    $region33: #{tpu_custom_call.1} parent=1 // pred_fallthru
      _
    %99 = vsyncpa [#allocation4], 1
    %100 = vsyncpa [#allocation6], 1

</llo_original>
